<compile_context>
chip_gen: v7x
topology: tpu7x:2x2x1
jax: 0.10.0
libtpu: 0.0.40
codegen_flags: <defaults>
</compile_context>

<pallas_src>
import math
import functools

import jax
import jax.numpy as jnp
from jax.experimental import pallas as pl
from jax.experimental.pallas import tpu as pltpu

SUBARRAY_DIMENSION = 128
BN_EPS = 1e-5


def get_chunks(in_channels, sub):
    # mirrors get_chunks(): ceil(in_channels * 9 / subarray_dimension)
    return math.ceil(in_channels * 9 / sub)


def _round_up(x, m):
    return ((x + m - 1) // m) * m


# --------------------------------------------------------------------------
# Pallas kernel: grid = (num_chunks,) -- one crossbar "chunk" per grid step.
#   z       = (W_int_chunk @ patches_int_chunk) * inv_qscale    (MXU bf16->f32)
#   normed  = BatchNorm1d(z)  (training-mode batch stats over valid B*L cols)
#   mtj     = stochastic sign of tanh(4*normed) vs uniform[-1,1), 0 where normed==0
#   o_ref  += sum_s  select(+/- 2**(w_slices-1-s)/(num_chunks*iterations))  per slice
# --------------------------------------------------------------------------
def _stox_kernel(w_ref, p_ref, r_ref, o_ref, *,
                 scales, c_out_pad, bl_valid, iterations, inv_qscale):
    chunk = pl.program_id(0)

    @pl.when(chunk == 0)
    def _init():
        o_ref[...] = jnp.zeros_like(o_ref)

    # ---- crossbar MAC (F.linear over the im2col patches) ----
    # Operands hold small integers exactly in bf16; rescale back to the
    # quantized-value domain with one multiply.
    z = jnp.dot(w_ref[...], p_ref[...],
                preferred_element_type=jnp.float32) * inv_qscale   # (C2p, BLp) f32

    # ---- BatchNorm1d, training mode, biased stats over the VALID columns ----
    # Padded columns/rows of z are exactly 0, so plain sums are correct as long
    # as we divide by the true B*L count.
    inv_n = 1.0 / float(bl_valid)
    mean = jnp.sum(z, axis=1, keepdims=True) * inv_n
    ex2 = jnp.sum(z * z, axis=1, keepdims=True) * inv_n
    var = ex2 - mean * mean
    normed = (z - mean) * jax.lax.rsqrt(var + BN_EPS)              # gamma=1, beta=0

    # ---- StoX_MTJ stochastic switching + bit-slice recombination ----
    th = jnp.tanh(4.0 * normed)                                    # EUP slot
    is_zero = normed == 0.0

    acc = jnp.zeros_like(o_ref)
    for it in range(iterations):
        rand = r_ref[it]                                           # uniform [-1, 1)
        # gen_weight_vector_and_sum: recombine w_slices bit-slices.  Slice
        # boundaries are multiples of 8 rows -> sublane-aligned zero-cost views.
        # TODO(synk): gen_weight_vector_and_sum's source was not provided; using
        # the standard recombination sum_s slice_s * 2**(w_slices-1-s), with the
        # 1/(num_chunks*iterations) factor folded into `scales`.
        for s, scale in enumerate(scales):
            lo, hi = s * c_out_pad, (s + 1) * c_out_pad
            sel = jnp.where(th[lo:hi, :] > rand[lo:hi, :],
                            jnp.float32(scale), jnp.float32(-scale))
            acc = acc + jnp.where(is_zero[lo:hi, :], 0.0, sel)

    o_ref[...] += acc


def _run_stox(w_stack, p_stack, rand, *, num_chunks, c2p, chunk_pad, blp,
              c_out_pad, iterations, scales, bl_valid, inv_qscale):
    kernel = functools.partial(_stox_kernel, scales=scales, c_out_pad=c_out_pad,
                               bl_valid=bl_valid, iterations=iterations,
                               inv_qscale=inv_qscale)

    # VMEM budget: double-buffered inputs + resident f32 output + temporaries.
    est = (2 * (c2p * chunk_pad * 2                 # weight chunk (bf16)
                + chunk_pad * blp * 2               # patches chunk (bf16)
                + iterations * c2p * blp * 4)       # rand (f32)
           + c_out_pad * blp * 4                    # resident output
           + 6 * c2p * blp * 4)                     # z / normed / th temporaries
    vmem_limit = int(min(max(2 * est + (1 << 20), 32 * 1024 * 1024),
                         60 * 1024 * 1024))         # stay under v7x's 64 MiB VMEM

    return pl.pallas_call(
        kernel,
        out_shape=jax.ShapeDtypeStruct((c_out_pad, blp), jnp.float32),
        grid=(num_chunks,),
        in_specs=[
            pl.BlockSpec((None, c2p, chunk_pad), lambda c: (c, 0, 0)),           # weight chunk
            pl.BlockSpec((None, chunk_pad, blp), lambda c: (c, 0, 0)),           # patches chunk
            pl.BlockSpec((None, iterations, c2p, blp), lambda c: (c, 0, 0, 0)),  # uniform[-1,1)
        ],
        out_specs=pl.BlockSpec((c_out_pad, blp), lambda c: (0, 0)),              # resident accumulator
        compiler_params=pltpu.CompilerParams(
            dimension_semantics=("arbitrary",),
            vmem_limit_bytes=vmem_limit,
        ),
    )(w_stack, p_stack, rand)


# --------------------------------------------------------------------------
# Plain-JAX glue: quantizers, im2col (F.unfold), chunking/padding, fold.
# --------------------------------------------------------------------------
def _unfold_to_ckk_bl(x, k, stride, padding):
    """F.unfold emitted directly in (C*k*k, B*L) layout (PyTorch channel-major
    CKK row ordering; columns ordered batch-major then spatial)."""
    b, c, h, w = x.shape
    xp = jnp.pad(x, ((0, 0), (0, 0), (padding, padding), (padding, padding)))
    ho = (h + 2 * padding - k) // stride + 1
    wo = (w + 2 * padding - k) // stride + 1
    cols = []
    for ki in range(k):
        for kj in range(k):
            sl = xp[:, :, ki:ki + ho * stride:stride, kj:kj + wo * stride:stride]
            cols.append(sl.reshape(b, c, ho * wo))                 # (B, C, L)
    p = jnp.stack(cols, axis=2)                                    # (B, C, k*k, L)
    p = p.transpose(1, 2, 0, 3).reshape(c * k * k, b * ho * wo)    # (CKK, B*L)
    return p, ho, wo


def stox_conv2d_forward(x, weight, seed, *, stride=1, padding=0,
                        a_bits=4, w_bits=4, w_slices=2, iterations=1):
    """Forward of StoX_Conv2d.  x: (B, C_in, H, W) NCHW, weight: (C_out*w_slices, C_in, k, k)."""
    c2, c_in, ksz, _ = weight.shape
    c_out = c2 // w_slices

    # --- activation quantization (a_bits != 1 branch) ---
    # TODO(synk): quantize_STE_round's source was not provided; forward value of
    # the usual STE rounding quantizer round(x*n)/n with n = 2**a_bits - 1 is
    # used.  We keep the *integer* part (round(x*n)) for an exact bf16 matmul.
    n_a = float(2 ** a_bits - 1)
    qa_int = jnp.round(x * n_a)                                    # integer-valued f32

    # --- weight standardization + quantization ---
    wf = weight.reshape(c2, -1)
    bw = weight - wf.mean(-1).reshape(c2, 1, 1, 1)
    std = bw.reshape(c2, -1).std(-1, ddof=1).reshape(c2, 1, 1, 1)  # torch.std: unbiased
    bw = bw / std
    # TODO(synk): WeightQuantize.apply source not provided; forward = uniform
    # symmetric quantization of clamp(bw, -1, 1) to 2**(w_bits/w_slices) - 1 levels.
    n_w = float(2 ** (w_bits // w_slices) - 1)
    qw_int = jnp.round(jnp.clip(bw, -1.0, 1.0) * n_w)              # integers in [-n_w, n_w]

    inv_qscale = 1.0 / (n_a * n_w)                                 # undoes both integer scalings

    # --- StoX_hardware_Conv ---
    patches, ho, wo = _unfold_to_ckk_bl(qa_int, ksz, stride, padding)   # (CKK, B*L) int-valued
    b = x.shape[0]
    ckk = c_in * ksz * ksz
    l = ho * wo
    bl = b * l

    num_chunks = get_chunks(c_in, SUBARRAY_DIMENSION)
    chunk_sz = math.ceil(ckk / num_chunks)          # torch.chunk semantics along dim 1

    # padded, lane/sublane-aligned layouts
    chunk_pad = _round_up(chunk_sz, 16)             # bf16-friendly K padding
    c_out_pad = _round_up(c_out, 8)                 # sublane-aligned slice boundaries
    c2p = w_slices * c_out_pad
    blp = _round_up(bl, 128)                        # lane-dense output width

    # weight: (C2, CKK) -> (w_slices, c_out_pad, CKK), then chunk+pad along CKK
    wq3 = qw_int.reshape(c2, ckk).reshape(w_slices, c_out, ckk)
    wq3 = jnp.pad(wq3, ((0, 0), (0, c_out_pad - c_out), (0, 0)))

    w_chunks, p_chunks = [], []
    for i in range(num_chunks):
        lo = i * chunk_sz
        hi = min(lo + chunk_sz, ckk)
        width = hi - lo
        wc = jnp.pad(wq3[:, :, lo:hi], ((0, 0), (0, 0), (0, chunk_pad - width)))
        w_chunks.append(wc.reshape(c2p, chunk_pad))
        pc = jnp.pad(patches[lo:hi, :], ((0, chunk_pad - width), (0, blp - bl)))
        p_chunks.append(pc)
    w_stack = jnp.stack(w_chunks, axis=0).astype(jnp.bfloat16)   # (nc, C2p, chunk_pad)
    p_stack = jnp.stack(p_chunks, axis=0).astype(jnp.bfloat16)   # (nc, chunk_pad, BLp)

    # uniform [-1, 1) randomness for the stochastic MTJ (torch.rand_like semantics)
    rand = jax.random.uniform(jax.random.PRNGKey(seed),
                              (num_chunks, iterations, c2p, blp),
                              dtype=jnp.float32, minval=-1.0, maxval=1.0)

    # bit-slice recombination constants with 1/(num_chunks*iterations) folded in
    scales = tuple(float(2 ** (w_slices - 1 - s)) / float(num_chunks * iterations)
                   for s in range(w_slices))

    out_pad = _run_stox(w_stack, p_stack, rand,
                        num_chunks=num_chunks, c2p=c2p, chunk_pad=chunk_pad,
                        blp=blp, c_out_pad=c_out_pad, iterations=iterations,
                        scales=scales, bl_valid=bl, inv_qscale=inv_qscale)

    out = out_pad[:c_out, :bl]                                   # (C_out, B*L)
    # F.fold with (1,1) kernel == reshape back to (B, C_out, Ho, Wo)
    result = out.reshape(c_out, b, l).transpose(1, 0, 2).reshape(b, c_out, ho, wo)
    return result


if __name__ == "__main__":
    key = jax.random.PRNGKey(0)
    kx, kw = jax.random.split(key)

    B, C_in, H, W = 2, 4, 16, 16
    C_out, KSZ = 4, 3
    W_SLICES = 2

    x = jax.random.normal(kx, (B, C_in, H, W), dtype=jnp.float32)

    # kaiming_normal_ init (fan_in mode): std = sqrt(2 / (C_in * k * k))
    fan_in = C_in * KSZ * KSZ
    weight = jax.random.normal(kw, (C_out * W_SLICES, C_in, KSZ, KSZ),
                               dtype=jnp.float32) * math.sqrt(2.0 / fan_in)

    out = stox_conv2d_forward(x, weight, seed=1234, stride=1, padding=0,
                              a_bits=4, w_bits=4, w_slices=W_SLICES, iterations=1)
    out = jax.block_until_ready(out)

    Ho = (H - KSZ) + 1
    assert out.shape == (B, C_out, Ho, Ho), out.shape
    assert bool(jnp.all(jnp.isfinite(out)))
    print("KERNEL_OK")
</pallas_src>

<mosaic_0001>
module attributes {stable_mosaic.version = 11 : i64} {
  func.func @_stox_kernel(%arg0: i32, %arg1: memref<1x16x48xbf16, #tpu.memory_space<vmem>>, %arg2: memref<1x48x512xbf16, #tpu.memory_space<vmem>>, %arg3: memref<1x1x16x512xf32, #tpu.memory_space<vmem>>, %arg4: memref<8x512xf32, #tpu.memory_space<vmem>>) attributes {dimension_semantics = [#tpu.dimension_semantics<arbitrary>], iteration_bounds = array<i64: 1>, scalar_prefetch = 0 : i64, scratch_operands = 0 : i64, tpu.core_type = #tpu.core_type<tc>, window_params = [{transform_indices = @transform_0, window_bounds = array<i64: 1, 16, 48>}, {transform_indices = @transform_1, window_bounds = array<i64: 1, 48, 512>}, {transform_indices = @transform_2, window_bounds = array<i64: 1, 1, 16, 512>}, {pipeline_mode = #tpu.pipeline_mode<synchronous>, transform_indices = @transform_3, window_bounds = array<i64: 8, 512>}]} {
    %c0_i32 = arith.constant 0 : i32
    %0 = arith.cmpi eq, %arg0, %c0_i32 : i32
    %1 = arith.extui %0 : i1 to i32
    %c0_i32_0 = arith.constant 0 : i32
    %2 = arith.cmpi ne, %1, %c0_i32_0 : i32
    scf.if %2 {
      %cst_29 = arith.constant 0.000000e+00 : f32
      %59 = vector.broadcast %cst_29 : f32 to vector<8x512xf32>
      %c0_30 = arith.constant 0 : index
      %c0_31 = arith.constant 0 : index
      %60 = vector.load %arg4[%c0_30, %c0_31] : memref<8x512xf32, #tpu.memory_space<vmem>>, vector<8x512xf32>
      tpu.vector_store %arg4[%c0_30, %c0_31], %59 {strides = array<i32>} : memref<8x512xf32, #tpu.memory_space<vmem>>, vector<8x512xf32>,
    } else {
    }
    %c0 = arith.constant 0 : index
    %c0_1 = arith.constant 0 : index
    %c0_2 = arith.constant 0 : index
    %3 = vector.load %arg1[%c0, %c0_1, %c0_2] : memref<1x16x48xbf16, #tpu.memory_space<vmem>>, vector<1x16x48xbf16>
    %4 = vector.shape_cast %3 : vector<1x16x48xbf16> to vector<16x48xbf16>
    %c0_3 = arith.constant 0 : index
    %c0_4 = arith.constant 0 : index
    %c0_5 = arith.constant 0 : index
    %5 = vector.load %arg2[%c0_3, %c0_4, %c0_5] : memref<1x48x512xbf16, #tpu.memory_space<vmem>>, vector<1x48x512xbf16>
    %6 = vector.shape_cast %5 : vector<1x48x512xbf16> to vector<48x512xbf16>
    %cst = arith.constant dense<0.000000e+00> : vector<16x512xf32>
    %7 = tpu.matmul %4, %6, %cst {dimension_numbers = #tpu.dot_dimension_numbers<[1], [0], [0], [1], [0, 0, 1, 1], [], []>} : vector<16x48xbf16>, vector<48x512xbf16>, vector<16x512xf32> -> vector<16x512xf32>
    %cst_6 = arith.constant 0.0222222228 : f32
    %8 = vector.broadcast %cst_6 : f32 to vector<16x512xf32>
    %9 = arith.mulf %7, %8 : vector<16x512xf32>
    %cst_7 = arith.constant dense<0.000000e+00> : vector<16xf32>
    %10 = vector.multi_reduction <add>, %9, %cst_7 [1] : vector<16x512xf32> to vector<16xf32>
    %11 = vector.shape_cast %10 : vector<16xf32> to vector<16x1xf32>
    %cst_8 = arith.constant 0.00255102036 : f32
    %12 = vector.broadcast %cst_8 : f32 to vector<16x1xf32>
    %13 = arith.mulf %11, %12 : vector<16x1xf32>
    %14 = arith.mulf %9, %9 : vector<16x512xf32>
    %cst_9 = arith.constant dense<0.000000e+00> : vector<16xf32>
    %15 = vector.multi_reduction <add>, %14, %cst_9 [1] : vector<16x512xf32> to vector<16xf32>
    %16 = vector.shape_cast %15 : vector<16xf32> to vector<16x1xf32>
    %cst_10 = arith.constant 0.00255102036 : f32
    %17 = vector.broadcast %cst_10 : f32 to vector<16x1xf32>
    %18 = arith.mulf %16, %17 : vector<16x1xf32>
    %19 = arith.mulf %13, %13 : vector<16x1xf32>
    %20 = arith.subf %18, %19 : vector<16x1xf32>
    %21 = vector.broadcast %13 : vector<16x1xf32> to vector<16x512xf32>
    %22 = arith.subf %9, %21 : vector<16x512xf32>
    %cst_11 = arith.constant 9.99999974E-6 : f32
    %23 = vector.broadcast %cst_11 : f32 to vector<16x1xf32>
    %24 = arith.addf %20, %23 : vector<16x1xf32>
    %25 = math.rsqrt %24 : vector<16x1xf32>
    %26 = vector.broadcast %25 : vector<16x1xf32> to vector<16x512xf32>
    %27 = arith.mulf %22, %26 : vector<16x512xf32>
    %cst_12 = arith.constant 4.000000e+00 : f32
    %28 = vector.broadcast %cst_12 : f32 to vector<16x512xf32>
    %29 = arith.mulf %28, %27 : vector<16x512xf32>
    %30 = math.tanh %29 : vector<16x512xf32>
    %cst_13 = arith.constant 0.000000e+00 : f32
    %31 = vector.broadcast %cst_13 : f32 to vector<16x512xf32>
    %32 = arith.cmpf oeq, %27, %31 : vector<16x512xf32>
    %cst_14 = arith.constant 0.000000e+00 : f32
    %33 = vector.broadcast %cst_14 : f32 to vector<8x512xf32>
    %c0_15 = arith.constant 0 : index
    %c0_16 = arith.constant 0 : index
    %c0_17 = arith.constant 0 : index
    %c0_18 = arith.constant 0 : index
    %34 = vector.load %arg3[%c0_15, %c0_16, %c0_17, %c0_18] : memref<1x1x16x512xf32, #tpu.memory_space<vmem>>, vector<1x1x16x512xf32>
    %35 = vector.shape_cast %34 : vector<1x1x16x512xf32> to vector<16x512xf32>
    %36 = vector.extract_strided_slice %30 {offsets = [0, 0], sizes = [8, 512], strides = [1, 1]} : vector<16x512xf32> to vector<8x512xf32>
    %37 = vector.extract_strided_slice %35 {offsets = [0, 0], sizes = [8, 512], strides = [1, 1]} : vector<16x512xf32> to vector<8x512xf32>
    %38 = arith.cmpf ogt, %36, %37 : vector<8x512xf32>
    %cst_19 = arith.constant 2.000000e+00 : f32
    %cst_20 = arith.constant -2.000000e+00 : f32
    %39 = vector.broadcast %cst_19 : f32 to vector<8x512xf32>
    %40 = vector.broadcast %cst_20 : f32 to vector<8x512xf32>
    %41 = arith.select %38, %39, %40 : vector<8x512xi1>, vector<8x512xf32>
    %42 = vector.extract_strided_slice %32 {offsets = [0, 0], sizes = [8, 512], strides = [1, 1]} : vector<16x512xi1> to vector<8x512xi1>
    %cst_21 = arith.constant 0.000000e+00 : f32
    %43 = vector.broadcast %cst_21 : f32 to vector<8x512xf32>
    %44 = arith.select %42, %43, %41 : vector<8x512xi1>, vector<8x512xf32>
    %45 = arith.addf %33, %44 : vector<8x512xf32>
    %46 = vector.extract_strided_slice %30 {offsets = [8, 0], sizes = [8, 512], strides = [1, 1]} : vector<16x512xf32> to vector<8x512xf32>
    %47 = vector.extract_strided_slice %35 {offsets = [8, 0], sizes = [8, 512], strides = [1, 1]} : vector<16x512xf32> to vector<8x512xf32>
    %48 = arith.cmpf ogt, %46, %47 : vector<8x512xf32>
    %cst_22 = arith.constant 1.000000e+00 : f32
    %cst_23 = arith.constant -1.000000e+00 : f32
    %49 = vector.broadcast %cst_22 : f32 to vector<8x512xf32>
    %50 = vector.broadcast %cst_23 : f32 to vector<8x512xf32>
    %51 = arith.select %48, %49, %50 : vector<8x512xi1>, vector<8x512xf32>
    %52 = vector.extract_strided_slice %32 {offsets = [8, 0], sizes = [8, 512], strides = [1, 1]} : vector<16x512xi1> to vector<8x512xi1>
    %cst_24 = arith.constant 0.000000e+00 : f32
    %53 = vector.broadcast %cst_24 : f32 to vector<8x512xf32>
    %54 = arith.select %52, %53, %51 : vector<8x512xi1>, vector<8x512xf32>
    %55 = arith.addf %45, %54 : vector<8x512xf32>
    %c0_25 = arith.constant 0 : index
    %c0_26 = arith.constant 0 : index
    %56 = vector.load %arg4[%c0_25, %c0_26] : memref<8x512xf32, #tpu.memory_space<vmem>>, vector<8x512xf32>
    %57 = arith.addf %56, %55 : vector<8x512xf32>
    %c0_27 = arith.constant 0 : index
    %c0_28 = arith.constant 0 : index
    %58 = vector.load %arg4[%c0_27, %c0_28] : memref<8x512xf32, #tpu.memory_space<vmem>>, vector<8x512xf32>
    tpu.vector_store %arg4[%c0_27, %c0_28], %57 {strides = array<i32>} : memref<8x512xf32, #tpu.memory_space<vmem>>, vector<8x512xf32>,
    return
  }
  func.func @transform_0(%arg0: i32) -> (i32, i32, i32) {
    %c0_i32 = arith.constant 0 : i32
    %c0_i32_0 = arith.constant 0 : i32
    %c0_i32_1 = arith.constant 0 : i32
    return %arg0, %c0_i32, %c0_i32_0 : i32, i32, i32
  }
  func.func @transform_1(%arg0: i32) -> (i32, i32, i32) {
    %c0_i32 = arith.constant 0 : i32
    %c0_i32_0 = arith.constant 0 : i32
    %c0_i32_1 = arith.constant 0 : i32
    return %arg0, %c0_i32, %c0_i32_0 : i32, i32, i32
  }
  func.func @transform_2(%arg0: i32) -> (i32, i32, i32, i32) {
    %c0_i32 = arith.constant 0 : i32
    %c0_i32_0 = arith.constant 0 : i32
    %c0_i32_1 = arith.constant 0 : i32
    %c0_i32_2 = arith.constant 0 : i32
    return %arg0, %c0_i32, %c0_i32_0, %c0_i32_1 : i32, i32, i32, i32
  }
  func.func @transform_3(%arg0: i32) -> (i32, i32) {
    %c0_i32 = arith.constant 0 : i32
    %c0_i32_0 = arith.constant 0 : i32
    %c0_i32_1 = arith.constant 0 : i32
    return %c0_i32, %c0_i32_0 : i32, i32
  }
}

</mosaic_0001>

<llo_original>
// kernel: tpu_custom_call.1
$region0: #{tpu_custom_call.1}
  #allocation0 [shape = 'u32[]', space=smem, size = 0x4, offset = 0x4, fixed_abs, tag = 'smem constant byte address 0x4 - core index']
  #allocation1 [shape = 'u32[144,128]{1,0:T(1,128)}', space=vmem, size = 0x12000, scoped, tag = 'internal scratch']
  %s0 = inlined_call_operand.hbm [shape: bf16[1,16,48], index: 0, kind: input, shape index: {}]
  %s1 = inlined_call_operand.hbm [shape: bf16[1,48,512], index: 1, kind: input, shape index: {}]
  %s2 = inlined_call_operand.hbm [shape: f32[1,1,16,512], index: 2, kind: input, shape index: {}]
  %s3 = inlined_call_operand.hbm [shape: f32[8,512], index: 3, kind: output, shape index: {}]
  %s4 = sld [smem:[#allocation0]]
  $region38: #{tpu_custom_call.1} parent=0
    _
  %s6 = ssub.s32 1, %s4
  %s7 = scalar_select 0, %s6, %s4
  $region1: #{tpu_custom_call.1} parent=0
    #allocation2 [shape = 'u8[4096]{0}', space=vmem, size = 0x1000, scoped, tag = 'input window, operand 0, single buffered']
    #allocation3 [shape = 's32[1]{0}', space=sflag, size = 0x4, scoped, tag = 'scoped memory for tpu_custom_call.1']
    #allocation4 [shape = 's32[1]{0}', space=sflag, size = 0x4, scoped, tag = 'scoped memory for tpu_custom_call.1']
    #allocation5 [shape = 'u8[49152]{0}', space=vmem, size = 0xc000, scoped, tag = 'input window, operand 1, single buffered']
    #allocation6 [shape = 's32[1]{0}', space=sflag, size = 0x4, scoped, tag = 'scoped memory for tpu_custom_call.1']
    #allocation7 [shape = 'u8[32768]{0}', space=vmem, size = 0x8000, scoped, tag = 'input window, operand 2, single buffered']
    #allocation8 [shape = 'u8[16384]{0}', space=vmem, size = 0x4000, scoped, tag = 'output window, operand 0, single buffered']
    %8 = vsyncpa [#allocation3], 0
    %9 = vsyncpa [#allocation6], 0
    %10 = vsyncpa [#allocation4], 0
    // Predicated region
    $region2: #{tpu_custom_call.1} parent=1 // pred_check
      _
    $region3: #{tpu_custom_call.1} parent=1 // pred_check_branch
      %12 = sbr.rel (0) target = $region5
    $region4: #{tpu_custom_call.1} parent=1 // pred_region
      %s14 = ssub.s32 128, 128
      %15 = vsyncadd [#allocation3], %s14
      %s16 = sshll.u32 [#allocation2], 4
      %s17 = int_to_ptr.vmem [resolvable:$true] %s16
      %22 = dma.hbm_to_vmem [thread:$0]  %s0, 128, %s17, [#allocation3], 64, 64, 4
    $region5: #{tpu_custom_call.1} parent=1 // pred_fallthru
      _
    // Predicated region
    $region6: #{tpu_custom_call.1} parent=1 // pred_check
      _
    $region7: #{tpu_custom_call.1} parent=1 // pred_check_branch
      %24 = sbr.rel (0) target = $region9
    $region8: #{tpu_custom_call.1} parent=1 // pred_region
      %s26 = ssub.s32 1536, 1536
      %27 = vsyncadd [#allocation6], %s26
      %s28 = sshll.u32 [#allocation5], 4
      %s29 = int_to_ptr.vmem [resolvable:$true] %s28
      %34 = dma.hbm_to_vmem [thread:$0]  %s1, 1536, %s29, [#allocation6], 256, 256, 16
    $region9: #{tpu_custom_call.1} parent=1 // pred_fallthru
      _
    // Predicated region
    $region10: #{tpu_custom_call.1} parent=1 // pred_check
      _
    $region11: #{tpu_custom_call.1} parent=1 // pred_check_branch
      %36 = sbr.rel (0) target = $region13
    $region12: #{tpu_custom_call.1} parent=1 // pred_region
      %s38 = ssub.s32 1024, 1024
      %39 = vsyncadd [#allocation6], %s38
      %s40 = sshll.u32 [#allocation7], 4
      %s41 = int_to_ptr.vmem [resolvable:$true] %s40
      %46 = dma.hbm_to_vmem [thread:$0]  %s2, 1024, %s41, [#allocation6], 512, 512, 32
    $region13: #{tpu_custom_call.1} parent=1 // pred_fallthru
      _
    // Predicated region
    $region14: #{tpu_custom_call.1} parent=1 // pred_check
      _
    $region15: #{tpu_custom_call.1} parent=1 // pred_check_branch
      %48 = sbr.rel (0) target = $region17
    $region16: #{tpu_custom_call.1} parent=1 // pred_region
      %49 = dma.done [#allocation3], 128
    $region17: #{tpu_custom_call.1} parent=1 // pred_fallthru
      _
    // Predicated region
    $region18: #{tpu_custom_call.1} parent=1 // pred_check
      _
    $region19: #{tpu_custom_call.1} parent=1 // pred_check_branch
      %51 = sbr.rel (0) target = $region21
    $region20: #{tpu_custom_call.1} parent=1 // pred_region
      %52 = dma.done [#allocation6], 1536
    $region21: #{tpu_custom_call.1} parent=1 // pred_fallthru
      _
    // Predicated region
    $region22: #{tpu_custom_call.1} parent=1 // pred_check
      _
    $region23: #{tpu_custom_call.1} parent=1 // pred_check_branch
      %54 = sbr.rel (0) target = $region25
    $region24: #{tpu_custom_call.1} parent=1 // pred_region
      %55 = dma.done [#allocation6], 1024
    $region25: #{tpu_custom_call.1} parent=1 // pred_fallthru
      _
    %p57 = scmp.eq.s32.totalorder 0, 0
    // Predicated region
    $region26: #{tpu_custom_call.1} parent=1 // pred_check
      %p58 = pneg %p57
    $region27: #{tpu_custom_call.1} parent=1 // pred_check_branch
      %60 = sbr.rel (%p58) target = $region29
    $region28: #{tpu_custom_call.1} parent=1 // pred_region
      %61 = vst [vmem:[#allocation8] sm:$0xff] 0.0
      %62 = vst [vmem:[#allocation8 + $0x8] sm:$0xff] 0.0
      %63 = vst [vmem:[#allocation8 + $0x10] sm:$0xff] 0.0
      %64 = vst [vmem:[#allocation8 + $0x18] sm:$0xff] 0.0
    $region29: #{tpu_custom_call.1} parent=1 // pred_fallthru
      _
    %v65 = vld [vmem:[#allocation2] sm:$0xf]
    %v66 = vld [vmem:[#allocation2 + $0x4] sm:$0xf]
    %v67 = vld [vmem:[#allocation5] sm:$0xff]
    %v68 = vld [vmem:[#allocation5 + $0x8] sm:$0xff]
    %v69 = vld [vmem:[#allocation5 + $0x10] sm:$0xff]
    %v70 = vld [vmem:[#allocation5 + $0x18] sm:$0xff]
    %v71 = vld [vmem:[#allocation5 + $0x20] sm:$0xff]
    %v72 = vld [vmem:[#allocation5 + $0x28] sm:$0xff]
    %v73 = vld [vmem:[#allocation5 + $0x30] sm:$0xff]
    %v74 = vld [vmem:[#allocation5 + $0x38] sm:$0xff]
    %v75 = vld [vmem:[#allocation5 + $0x40] sm:$0xff]
    %v76 = vld [vmem:[#allocation5 + $0x48] sm:$0xff]
    %v77 = vld [vmem:[#allocation5 + $0x50] sm:$0xff]
    %v78 = vld [vmem:[#allocation5 + $0x58] sm:$0xff]
    %v81 = vunpack.c.l.b16 %v65
    %v82 = vunpack.c.l.b16 %v66
    %v83 = vpack.c.b16 %v82, %v81
    %v96 = vunpack.c.l.b16 %v67
    %v97 = vunpack.c.h.b16 %v67
    %v98 = vunpack.c.l.b16 %v68
    %v99 = vunpack.c.h.b16 %v68
    %v100 = vunpack.c.l.b16 %v69
    %v101 = vunpack.c.h.b16 %v69
    %v102 = vunpack.c.l.b16 %v70
    %v103 = vunpack.c.h.b16 %v70
    %v104 = vunpack.c.l.b16 %v71
    %v105 = vunpack.c.h.b16 %v71
    %v106 = vunpack.c.l.b16 %v72
    %v107 = vunpack.c.h.b16 %v72
    %v108 = vunpack.c.l.b16 %v73
    %v109 = vunpack.c.h.b16 %v73
    %v110 = vunpack.c.l.b16 %v74
    %v111 = vunpack.c.h.b16 %v74
    %v112 = vunpack.c.l.b16 %v75
    %v113 = vunpack.c.h.b16 %v75
    %v114 = vunpack.c.l.b16 %v76
    %v115 = vunpack.c.h.b16 %v76
    %v116 = vunpack.c.l.b16 %v77
    %v117 = vunpack.c.h.b16 %v77
    %v118 = vunpack.c.l.b16 %v78
    %v119 = vunpack.c.h.b16 %v78
    %v120 = vpack.c.b16 %v100, %v96
    %v121 = vpack.c.b16 %v101, %v97
    %v122 = vpack.c.b16 %v102, %v98
    %v123 = vpack.c.b16 %v103, %v99
    %v124 = vpack.c.b16 %v108, %v104
    %v125 = vpack.c.b16 %v109, %v105
    %v126 = vpack.c.b16 %v110, %v106
    %v127 = vpack.c.b16 %v111, %v107
    %v128 = vpack.c.b16 %v116, %v112
    %v129 = vpack.c.b16 %v117, %v113
    %v130 = vpack.c.b16 %v118, %v114
    %v131 = vpack.c.b16 %v119, %v115
    %vm144 = vcmask 392192
    %v146 = vsel %vm144, %v83, 0
    %148 = vmatprep.subr.bf16.mxu0 %v121
    %149 = vmatpush1.bf16.msra.mxu0 %v120
    %150 = vmatprep.subr.bf16.mxu0 %v125
    %151 = vmatpush1.bf16.msra.mxu0 %v124
    %152 = vmatprep.subr.bf16.mxu0 %v129
    %153 = vmatpush1.bf16.msra.mxu0 %v128
    %154 = vmatprep.subr.bf16.mxu0 0
    %155 = vmatpush1.bf16.msra.mxu0 0
    %156 = vmatprep.subr.bf16.mxu0 0
    %157 = vmatpush1.bf16.msra.mxu0 0
    %158 = vmatprep.subr.bf16.mxu0 0
    %159 = vmatpush1.bf16.msra.mxu0 0
    %160 = vmatprep.subr.bf16.mxu0 0
    %161 = vmatpush1.bf16.msra.mxu0 0
    %162 = vmatprep.subr.bf16.mxu0 0
    %163 = vmatpush1.bf16.msra.mxu0 0
    %164 = vmatprep.subr.bf16.mxu0 0
    %165 = vmatpush1.bf16.msra.mxu0 0
    %166 = vmatprep.subr.bf16.mxu0 0
    %167 = vmatpush1.bf16.msra.mxu0 0
    %168 = vmatprep.subr.bf16.mxu0 0
    %169 = vmatpush1.bf16.msra.mxu0 0
    %170 = vmatprep.subr.bf16.mxu0 0
    %171 = vmatpush1.bf16.msra.mxu0 0
    %172 = vmatprep.subr.bf16.mxu0 0
    %173 = vmatpush1.bf16.msra.mxu0 0
    %174 = vmatprep.subr.bf16.mxu0 0
    %175 = vmatpush1.bf16.msra.mxu0 0
    %176 = vmatprep.subr.bf16.mxu0 0
    %177 = vmatpush1.bf16.msra.mxu0 0
    %178 = vmatprep.subr.bf16.mxu0 0
    %179 = vmatpush1.bf16.msra.mxu0 0
    %180 = vmatprep.mubr.bf16.mxu0 0
    %181 = vmatmul.mubr.bf16.gmra.mrb[0].mxu0 %v146
    %v182 = vpop.f32.mrb[0].mxu0
    %v183 = vadd.f32 0.0, %v182
    %v184 = vpop.f32.mrb[0].mxu0
    %v185 = vadd.f32 0.0, %v184
    %v186 = vpop.f32.mrb[0].mxu0
    %v187 = vadd.f32 0.0, %v186
    %v188 = vpop.f32.mrb[0].mxu0
    %v189 = vadd.f32 0.0, %v188
    %190 = vdwg.mxu0
    %191 = vmatprep.subr.bf16.mxu0 %v123
    %192 = vmatpush1.bf16.msra.mxu0 %v122
    %193 = vmatprep.subr.bf16.mxu0 %v127
    %194 = vmatpush1.bf16.msra.mxu0 %v126
    %195 = vmatprep.subr.bf16.mxu0 %v131
    %196 = vmatpush1.bf16.msra.mxu0 %v130
    %197 = vmatprep.subr.bf16.mxu0 0
    %198 = vmatpush1.bf16.msra.mxu0 0
    %199 = vmatprep.subr.bf16.mxu0 0
    %200 = vmatpush1.bf16.msra.mxu0 0
    %201 = vmatprep.subr.bf16.mxu0 0
    %202 = vmatpush1.bf16.msra.mxu0 0
    %203 = vmatprep.subr.bf16.mxu0 0
    %204 = vmatpush1.bf16.msra.mxu0 0
    %205 = vmatprep.subr.bf16.mxu0 0
    %206 = vmatpush1.bf16.msra.mxu0 0
    %207 = vmatprep.subr.bf16.mxu0 0
    %208 = vmatpush1.bf16.msra.mxu0 0
    %209 = vmatprep.subr.bf16.mxu0 0
    %210 = vmatpush1.bf16.msra.mxu0 0
    %211 = vmatprep.subr.bf16.mxu0 0
    %212 = vmatpush1.bf16.msra.mxu0 0
    %213 = vmatprep.subr.bf16.mxu0 0
    %214 = vmatpush1.bf16.msra.mxu0 0
    %215 = vmatprep.subr.bf16.mxu0 0
    %216 = vmatpush1.bf16.msra.mxu0 0
    %217 = vmatprep.subr.bf16.mxu0 0
    %218 = vmatpush1.bf16.msra.mxu0 0
    %219 = vmatprep.subr.bf16.mxu0 0
    %220 = vmatpush1.bf16.msra.mxu0 0
    %221 = vmatprep.subr.bf16.mxu0 0
    %222 = vmatpush1.bf16.msra.mxu0 0
    %223 = vmatprep.mubr.bf16.mxu0 0
    %224 = vmatmul.mubr.bf16.gmra.mrb[0].mxu0 %v146
    %v225 = vpop.f32.mrb[0].mxu0
    %v226 = vadd.f32 0.0, %v225
    %v227 = vpop.f32.mrb[0].mxu0
    %v228 = vadd.f32 0.0, %v227
    %v229 = vpop.f32.mrb[0].mxu0
    %v230 = vadd.f32 0.0, %v229
    %v231 = vpop.f32.mrb[0].mxu0
    %v232 = vadd.f32 0.0, %v231
    %233 = vdwg.mxu0
    %v234 = vmul.f32 %v183, 0.022222223
    %v235 = vmul.f32 %v185, 0.022222223
    %v236 = vmul.f32 %v226, 0.022222223
    %v237 = vmul.f32 %v228, 0.022222223
    %v238 = vmul.f32 %v187, 0.022222223
    %v239 = vmul.f32 %v189, 0.022222223
    %v240 = vmul.f32 %v230, 0.022222223
    %v241 = vmul.f32 %v232, 0.022222223
    %v242 = vadd.f32 %v234, %v235
    %v243 = vadd.f32 %v242, %v236
    %v244 = vadd.f32 %v243, %v237
    %245 = vadd.xlane.f32.xlu0 %v244
    %v246 = vpop.xlane.xlu0 %245
    %v247 = vadd.f32 %v238, %v239
    %v248 = vadd.f32 %v247, %v240
    %v249 = vadd.f32 %v248, %v241
    %250 = vadd.xlane.f32.xlu0 %v249
    %v251 = vpop.xlane.xlu0 %250
    %v252 = vmul.f32 %v246, 0.0025510204
    %v253 = vmul.f32 %v251, 0.0025510204
    %v254 = vmul.f32 %v234, %v234
    %v255 = vmul.f32 %v235, %v235
    %v256 = vmul.f32 %v236, %v236
    %v257 = vmul.f32 %v237, %v237
    %v258 = vmul.f32 %v238, %v238
    %v259 = vmul.f32 %v239, %v239
    %v260 = vmul.f32 %v240, %v240
    %v261 = vmul.f32 %v241, %v241
    %v262 = vadd.f32 %v254, %v255
    %v263 = vadd.f32 %v262, %v256
    %v264 = vadd.f32 %v263, %v257
    %265 = vadd.xlane.f32.xlu0 %v264
    %v266 = vpop.xlane.xlu0 %265
    %v267 = vadd.f32 %v258, %v259
    %v268 = vadd.f32 %v267, %v260
    %v269 = vadd.f32 %v268, %v261
    %270 = vadd.xlane.f32.xlu0 %v269
    %v271 = vpop.xlane.xlu0 %270
    %v272 = vmul.f32 %v266, 0.0025510204
    %v273 = vmul.f32 %v271, 0.0025510204
    %v274 = vmul.f32 %v252, %v252
    %v275 = vmul.f32 %v253, %v253
    %v276 = vsub.f32 %v272, %v274
    %v277 = vsub.f32 %v273, %v275
    %v278 = vsub.f32 %v234, %v252
    %v279 = vsub.f32 %v235, %v252
    %v280 = vsub.f32 %v236, %v252
    %v281 = vsub.f32 %v237, %v252
    %v282 = vsub.f32 %v238, %v253
    %v283 = vsub.f32 %v239, %v253
    %v284 = vsub.f32 %v240, %v253
    %v285 = vsub.f32 %v241, %v253
    %v286 = vadd.f32 %v276, 1e-05
    %v287 = vadd.f32 %v277, 1e-05
    %v288 = vrsqrt.pop %v286
    %v289 = vrsqrt.pop %v287
    %v290 = vmul.f32 %v278, %v288
    %v291 = vmul.f32 %v279, %v288
    %v292 = vmul.f32 %v280, %v288
    %v293 = vmul.f32 %v281, %v288
    %v294 = vmul.f32 %v282, %v289
    %v295 = vmul.f32 %v283, %v289
    %v296 = vmul.f32 %v284, %v289
    %v297 = vmul.f32 %v285, %v289
    %v298 = vmul.f32 %v290, 4.0
    %v299 = vmul.f32 %v291, 4.0
    %v300 = vmul.f32 %v292, 4.0
    %v301 = vmul.f32 %v293, 4.0
    %v302 = vmul.f32 %v294, 4.0
    %v303 = vmul.f32 %v295, 4.0
    %v304 = vmul.f32 %v296, 4.0
    %v305 = vmul.f32 %v297, 4.0
    %v306 = vtanh.pop %v298
    %v307 = vtanh.pop %v299
    %v308 = vtanh.pop %v300
    %v309 = vtanh.pop %v301
    %v310 = vtanh.pop %v302
    %v311 = vtanh.pop %v303
    %v312 = vtanh.pop %v304
    %v313 = vtanh.pop %v305
    %vm314 = vcmp.eq.f32.partialorder %v290, 0.0
    %vm315 = vcmp.eq.f32.partialorder %v291, 0.0
    %vm316 = vcmp.eq.f32.partialorder %v292, 0.0
    %vm317 = vcmp.eq.f32.partialorder %v293, 0.0
    %vm318 = vcmp.eq.f32.partialorder %v294, 0.0
    %vm319 = vcmp.eq.f32.partialorder %v295, 0.0
    %vm320 = vcmp.eq.f32.partialorder %v296, 0.0
    %vm321 = vcmp.eq.f32.partialorder %v297, 0.0
    %v322 = vld [vmem:[#allocation7] sm:$0xff]
    %v323 = vld [vmem:[#allocation7 + $0x8] sm:$0xff]
    %v324 = vld [vmem:[#allocation7 + $0x10] sm:$0xff]
    %v325 = vld [vmem:[#allocation7 + $0x18] sm:$0xff]
    %v326 = vld [vmem:[#allocation7 + $0x20] sm:$0xff]
    %v327 = vld [vmem:[#allocation7 + $0x28] sm:$0xff]
    %v328 = vld [vmem:[#allocation7 + $0x30] sm:$0xff]
    %v329 = vld [vmem:[#allocation7 + $0x38] sm:$0xff]
    %vm330 = vcmp.gt.f32.partialorder %v306, %v322
    %vm331 = vcmp.gt.f32.partialorder %v307, %v323
    %vm332 = vcmp.gt.f32.partialorder %v308, %v324
    %vm333 = vcmp.gt.f32.partialorder %v309, %v325
    %v334 = vsel %vm330, 2.0, -2.0
    %v335 = vsel %vm331, 2.0, -2.0
    %v336 = vsel %vm332, 2.0, -2.0
    %v337 = vsel %vm333, 2.0, -2.0
    %v338 = vsel %vm314, 0.0, %v334
    %v339 = vsel %vm315, 0.0, %v335
    %v340 = vsel %vm316, 0.0, %v336
    %v341 = vsel %vm317, 0.0, %v337
    %v342 = vadd.f32 %v338, 0.0
    %v343 = vadd.f32 %v339, 0.0
    %v344 = vadd.f32 %v340, 0.0
    %v345 = vadd.f32 %v341, 0.0
    %vm346 = vcmp.gt.f32.partialorder %v310, %v326
    %vm347 = vcmp.gt.f32.partialorder %v311, %v327
    %vm348 = vcmp.gt.f32.partialorder %v312, %v328
    %vm349 = vcmp.gt.f32.partialorder %v313, %v329
    %v350 = vsel %vm346, 1.0, -1.0
    %v351 = vsel %vm347, 1.0, -1.0
    %v352 = vsel %vm348, 1.0, -1.0
    %v353 = vsel %vm349, 1.0, -1.0
    %v354 = vsel %vm318, 0.0, %v350
    %v355 = vsel %vm319, 0.0, %v351
    %v356 = vsel %vm320, 0.0, %v352
    %v357 = vsel %vm321, 0.0, %v353
    %v358 = vadd.f32 %v342, %v354
    %v359 = vadd.f32 %v343, %v355
    %v360 = vadd.f32 %v344, %v356
    %v361 = vadd.f32 %v345, %v357
    %v362 = vld [vmem:[#allocation8] sm:$0xff]
    %v363 = vld [vmem:[#allocation8 + $0x8] sm:$0xff]
    %v364 = vld [vmem:[#allocation8 + $0x10] sm:$0xff]
    %v365 = vld [vmem:[#allocation8 + $0x18] sm:$0xff]
    %v366 = vadd.f32 %v362, %v358
    %v367 = vadd.f32 %v363, %v359
    %v368 = vadd.f32 %v364, %v360
    %v369 = vadd.f32 %v365, %v361
    %370 = vst [vmem:[#allocation8] sm:$0xff] %v366
    %371 = vst [vmem:[#allocation8 + $0x8] sm:$0xff] %v367
    %372 = vst [vmem:[#allocation8 + $0x10] sm:$0xff] %v368
    %373 = vst [vmem:[#allocation8 + $0x18] sm:$0xff] %v369
    // Predicated region
    $region30: #{tpu_custom_call.1} parent=1 // pred_check
      _
    $region31: #{tpu_custom_call.1} parent=1 // pred_check_branch
      %375 = sbr.rel (0) target = $region33
    $region32: #{tpu_custom_call.1} parent=1 // pred_region
      %s377 = ssub.s32 512, 512
      %378 = vsyncadd [#allocation4], %s377
      %s380 = sshll.u32 [#allocation8], 4
      %s381 = int_to_ptr.vmem [resolvable:$true] %s380
      %383 = dma.vmem_to_hbm [thread:$0]  %s381, 512, %s3, [#allocation4]
    $region33: #{tpu_custom_call.1} parent=1 // pred_fallthru
      _
    // Predicated region
    $region34: #{tpu_custom_call.1} parent=1 // pred_check
      _
    $region35: #{tpu_custom_call.1} parent=1 // pred_check_branch
      %385 = sbr.rel (0) target = $region37
    $region36: #{tpu_custom_call.1} parent=1 // pred_region
      %386 = dma.done [#allocation4], 512
    $region37: #{tpu_custom_call.1} parent=1 // pred_fallthru
      _
    %387 = vsyncpa [#allocation3], 1
    %388 = vsyncpa [#allocation6], 1
    %389 = vsyncpa [#allocation4], 1

</llo_original>
